<compile_context>
chip_gen: v5e
topology: v5e:2x2
jax: 0.10.0
libtpu: 0.0.40
codegen_flags: <defaults>
</compile_context>

<pallas_src>
import functools

import jax
import jax.numpy as jnp
from jax import lax
from jax.experimental import pallas as pl
from jax.experimental.pallas import tpu as pltpu


def _round_up(x, m):
    return ((x + m - 1) // m) * m


def _int_pow(x, n):
    # Small positive integer power via a multiply chain (no EUP ops).
    r = x
    for _ in range(int(n) - 1):
        r = r * x
    return r


def _pow_static(x, p):
    """x ** p for x > 0 with trace-time-constant p, minimizing EUP work."""
    if p == 1.0:
        return x
    two_p = 2.0 * p
    if two_p == int(two_p) and 1 <= int(two_p) <= 16:
        n2 = int(two_p)
        if n2 % 2 == 0:                     # integer p: mul chain only
            return _int_pow(x, n2 // 2)
        half = jnp.sqrt(x)                  # half-integer p: mul chain + sqrt
        n = n2 // 2
        return half if n == 0 else _int_pow(x, n) * half
    return jnp.exp(p * jnp.log(x))          # generic fallback


def _root_static(m, p):
    # Final 1/p root; applied per row only (negligible cost either way).
    if p == 1.0:
        return m
    if p == 2.0:
        return jnp.sqrt(m)
    if p == 0.5:
        return m * m
    return m ** (1.0 / p)


def _gem_kernel(p_ref, x_ref, o_ref, acc_ref, *, eps, hw, thw, needs_mask,
                p_static):
    # p_ref: SMEM (1,) f32 | x_ref: VMEM (TR, THW) | o_ref: VMEM (1, 1, TR)
    # acc_ref: VMEM (TR, 1) f32 accumulator (persists across the k axis).
    k = pl.program_id(1)

    @pl.when(k == 0)
    def _():
        acc_ref[...] = jnp.zeros_like(acc_ref)

    x = x_ref[...].astype(jnp.float32)
    xc = jnp.maximum(x, eps)                 # clamp(min=eps); keeps tail rows log-safe
    if p_static is not None:
        xp = _pow_static(xc, p_static)       # no per-element log/exp
    else:
        xp = jnp.exp(p_ref[0] * jnp.log(xc))  # dynamic-p fallback
    if needs_mask:
        lane = lax.broadcasted_iota(jnp.int32, xp.shape, 1) + k * thw
        xp = jnp.where(lane < hw, xp, 0.0)   # drop padded lanes
    acc_ref[...] += jnp.sum(xp, axis=-1, keepdims=True)

    @pl.when(k == pl.num_programs(1) - 1)
    def _():
        m = acc_ref[...] * (1.0 / hw)        # mean over the true (H, W) window
        if p_static is not None:
            y = _root_static(m, p_static)
        else:
            y = jnp.exp(jnp.log(m) * (1.0 / p_ref[0]))
        # Lane-dense store: (TR, 1) -> (1, 1, TR) so writeback is unmasked.
        o_ref[...] = y.T.reshape(1, 1, -1).astype(o_ref.dtype)


def gem_pallas(x, p, eps=1e-6):
    """GeM pooling. x: (N, C, H, W); p: scalar/(1,) float. Returns (N, C, 1, 1)."""
    N, C, H, W = x.shape
    R, HW = N * C, H * W
    x2 = x.reshape(R, HW)                    # keep caller dtype (bf16 stays bf16)
    itemsize = x2.dtype.itemsize

    p_arr = jnp.asarray(p, dtype=jnp.float32).reshape(1)
    # Specialize pow at trace time when p is concrete (not a tracer).
    try:
        p_static = float(jnp.asarray(p).reshape(-1)[0])
    except Exception:
        p_static = None

    # Generation-aware VMEM budget (v5e/v6e: 128 MiB, v7x: 64 MiB per core).
    try:
        vmem_cap = int(pltpu.get_tpu_info().vmem_capacity_bytes)
    except Exception:
        vmem_cap = 64 * 1024 * 1024
    block_budget = min(16 << 20, max(4 << 20, vmem_cap // 6))  # per input block

    # Lane-dense HW: pad to a multiple of 128 only when ragged (e.g. 7x7 maps).
    hw_lane = HW if HW % 128 == 0 else _round_up(HW, 128)

    rows_in_budget = block_budget // (hw_lane * itemsize)
    if rows_in_budget >= 8:
        # Common case: whole (H, W) window per block; size rows to the budget
        # but never bigger than the data (no artificial min-block-count floor).
        TR = max(8, min((rows_in_budget // 8) * 8, _round_up(R, 8)))
        THW = hw_lane
    else:
        # Huge HW: tile the reduction axis instead of shrinking the block.
        TR = 8
        THW = max(128, ((block_budget // (8 * itemsize)) // 128) * 128)

    HW_total = _round_up(hw_lane, THW)
    if HW_total != HW:
        x2 = jnp.pad(x2, ((0, 0), (0, HW_total - HW)))   # lane pad (zeros)
    needs_mask = HW_total != HW

    G = pl.cdiv(R, TR)            # ragged last row block; no jnp.pad of rows
    K = HW_total // THW
    block_bytes = TR * THW * itemsize
    vmem_limit = int(min(vmem_cap, max(32 << 20, 2 * block_bytes + (8 << 20))))

    if p_static is None:
        trans_per_elem = 2
    elif float(p_static).is_integer():
        trans_per_elem = 0
    else:
        trans_per_elem = 1

    out = pl.pallas_call(
        functools.partial(_gem_kernel, eps=float(eps), hw=HW, thw=THW,
                          needs_mask=needs_mask, p_static=p_static),
        out_shape=jax.ShapeDtypeStruct((G, 1, TR), x.dtype),
        grid=(G, K),
        in_specs=[
            pl.BlockSpec(memory_space=pltpu.MemorySpace.SMEM),   # p scalar
            pl.BlockSpec((TR, THW), lambda i, k: (i, k)),        # x tile
        ],
        out_specs=pl.BlockSpec((1, 1, TR), lambda i, k: (i, 0, 0)),
        scratch_shapes=[pltpu.VMEM((TR, 1), jnp.float32)],
        compiler_params=pltpu.CompilerParams(
            dimension_semantics=("parallel", "arbitrary"),
            vmem_limit_bytes=vmem_limit,
        ),
        cost_estimate=pl.CostEstimate(
            flops=4 * R * HW,
            transcendentals=trans_per_elem * R * HW,
            bytes_accessed=R * HW_total * itemsize + G * TR * itemsize,
        ),
    )(p_arr, x2)

    return out.reshape(G * TR)[:R].reshape(N, C, 1, 1)


def gem_reference(x, p, eps=1e-6):
    p0 = jnp.asarray(p).reshape(-1)[0]
    xc = jnp.maximum(x, eps)
    xp = xc ** p0
    m = jnp.mean(xp, axis=(-2, -1), keepdims=True)
    return m ** (1.0 / p0)


if __name__ == "__main__":
    key = jax.random.PRNGKey(0)
    N, C, H, W = 2, 4, 16, 16
    x = jax.random.uniform(key, (N, C, H, W), dtype=jnp.float32)

    # Deterministic parameter init, matching GeM.__init__: p = ones(1) * 1.5
    p = jnp.ones((1,), dtype=jnp.float32) * 1.5
    eps = 1e-6

    y = gem_pallas(x, p, eps)
    jax.block_until_ready(y)

    y_ref = gem_reference(x, p, eps)
    assert y.shape == (N, C, 1, 1), y.shape
    max_err = jnp.max(jnp.abs(y - y_ref))
    assert jnp.allclose(y, y_ref, rtol=1e-4, atol=1e-6), f"max abs err {max_err}"

    print("KERNEL_OK")
</pallas_src>

<mosaic_0001>
module attributes {stable_mosaic.version = 11 : i64} {
  func.func @_gem_kernel(%arg0: i32, %arg1: i32, %arg2: memref<1xf32, #tpu.memory_space<smem>>, %arg3: memref<8x256xf32, #tpu.memory_space<vmem>>, %arg4: memref<1x1x8xf32, #tpu.memory_space<vmem>>, %arg5: memref<8x1xf32, #tpu.memory_space<vmem>>) attributes {dimension_semantics = [#tpu.dimension_semantics<parallel>, #tpu.dimension_semantics<arbitrary>], iteration_bounds = array<i64: 1, 1>, scalar_prefetch = 0 : i64, scratch_operands = 1 : i64, tpu.core_type = #tpu.core_type<tc>, window_params = [{transform_indices = @transform_0, window_bounds = array<i64: 1>}, {transform_indices = @transform_1, window_bounds = array<i64: 8, 256>}, {transform_indices = @transform_2, window_bounds = array<i64: 1, 1, 8>}]} {
    %c0_i32 = arith.constant 0 : i32
    %0 = arith.cmpi eq, %arg1, %c0_i32 : i32
    %1 = arith.extui %0 : i1 to i32
    %c0_i32_0 = arith.constant 0 : i32
    %2 = arith.cmpi ne, %1, %c0_i32_0 : i32
    scf.if %2 {
      %cst_9 = arith.constant 0.000000e+00 : f32
      %16 = vector.broadcast %cst_9 : f32 to vector<8x1xf32>
      %c0_10 = arith.constant 0 : index
      %c0_11 = arith.constant 0 : index
      %17 = vector.load %arg5[%c0_10, %c0_11] : memref<8x1xf32, #tpu.memory_space<vmem>>, vector<8x1xf32>
      tpu.vector_store %arg5[%c0_10, %c0_11], %16 {strides = array<i32>} : memref<8x1xf32, #tpu.memory_space<vmem>>, vector<8x1xf32>,
    } else {
    }
    %c0 = arith.constant 0 : index
    %c0_1 = arith.constant 0 : index
    %3 = vector.load %arg3[%c0, %c0_1] : memref<8x256xf32, #tpu.memory_space<vmem>>, vector<8x256xf32>
    %cst = arith.constant 9.99999997E-7 : f32
    %4 = vector.broadcast %cst : f32 to vector<8x256xf32>
    %5 = arith.maximumf %3, %4 : vector<8x256xf32>
    %6 = math.sqrt %5 : vector<8x256xf32>
    %7 = arith.mulf %5, %6 : vector<8x256xf32>
    %c0_2 = arith.constant 0 : index
    %c0_3 = arith.constant 0 : index
    %8 = vector.load %arg5[%c0_2, %c0_3] : memref<8x1xf32, #tpu.memory_space<vmem>>, vector<8x1xf32>
    %cst_4 = arith.constant dense<0.000000e+00> : vector<8xf32>
    %9 = vector.multi_reduction <add>, %7, %cst_4 [1] : vector<8x256xf32> to vector<8xf32>
    %10 = vector.shape_cast %9 : vector<8xf32> to vector<8x1xf32>
    %11 = arith.addf %8, %10 : vector<8x1xf32>
    %c0_5 = arith.constant 0 : index
    %c0_6 = arith.constant 0 : index
    %12 = vector.load %arg5[%c0_5, %c0_6] : memref<8x1xf32, #tpu.memory_space<vmem>>, vector<8x1xf32>
    tpu.vector_store %arg5[%c0_5, %c0_6], %11 {strides = array<i32>} : memref<8x1xf32, #tpu.memory_space<vmem>>, vector<8x1xf32>,
    %c0_i32_7 = arith.constant 0 : i32
    %13 = arith.cmpi eq, %arg1, %c0_i32_7 : i32
    %14 = arith.extui %13 : i1 to i32
    %c0_i32_8 = arith.constant 0 : i32
    %15 = arith.cmpi ne, %14, %c0_i32_8 : i32
    scf.if %15 {
      %c0_9 = arith.constant 0 : index
      %c0_10 = arith.constant 0 : index
      %16 = vector.load %arg5[%c0_9, %c0_10] : memref<8x1xf32, #tpu.memory_space<vmem>>, vector<8x1xf32>
      %cst_11 = arith.constant 3.906250e-03 : f32
      %17 = vector.broadcast %cst_11 : f32 to vector<8x1xf32>
      %18 = arith.mulf %16, %17 : vector<8x1xf32>
      %cst_12 = arith.constant 0.666666686 : f32
      %19 = vector.broadcast %cst_12 : f32 to vector<8x1xf32>
      %20 = math.powf %18, %19 : vector<8x1xf32>
      %21 = tpu.transpose %20, [1, 0] : vector<8x1xf32> -> vector<1x8xf32>
      %22 = vector.shape_cast %21 : vector<1x8xf32> to vector<1x1x8xf32>
      %c0_13 = arith.constant 0 : index
      %c0_14 = arith.constant 0 : index
      %c0_15 = arith.constant 0 : index
      %23 = vector.load %arg4[%c0_13, %c0_14, %c0_15] : memref<1x1x8xf32, #tpu.memory_space<vmem>>, vector<1x1x8xf32>
      tpu.vector_store %arg4[%c0_13, %c0_14, %c0_15], %22 {strides = array<i32>} : memref<1x1x8xf32, #tpu.memory_space<vmem>>, vector<1x1x8xf32>,
    } else {
    }
    return
  }
  func.func @transform_0(%arg0: i32, %arg1: i32) -> i32 {
    %c0_i32 = arith.constant 0 : i32
    %c0_i32_0 = arith.constant 0 : i32
    return %c0_i32 : i32
  }
  func.func @transform_1(%arg0: i32, %arg1: i32) -> (i32, i32) {
    %c0_i32 = arith.constant 0 : i32
    return %arg0, %arg1 : i32, i32
  }
  func.func @transform_2(%arg0: i32, %arg1: i32) -> (i32, i32, i32) {
    %c0_i32 = arith.constant 0 : i32
    %c0_i32_0 = arith.constant 0 : i32
    %c0_i32_1 = arith.constant 0 : i32
    return %arg0, %c0_i32, %c0_i32_0 : i32, i32, i32
  }
}

</mosaic_0001>

<llo_original>
// kernel: tpu_custom_call.1
$region0: #{tpu_custom_call.1}
  #allocation0 [shape = 'u32[]', space=smem, size = 0x4, offset = 0x4, fixed_abs, tag = 'smem constant byte address 0x4 - core index']
  #allocation1 [shape = 'u32[72,128]{1,0:T(1,128)}', space=vmem, size = 0x9000, scoped, tag = 'internal scratch']
  #allocation2 [shape = 'f32[8,1]{1,0:T(8,128)}', space=vmem, size = 0x1000, scoped, tag = 'scratch operand']
  #allocation3 [shape = 'f32[1]{0:T(128)S(6)}', space=smem, size = 0x200, scoped, tag = 'scoped memory for tpu_custom_call.1']
  %s0 = inlined_call_operand.<no memory space> [shape: f32[1], index: 0, kind: input, shape index: {}]
  %s1 = inlined_call_operand.hbm [shape: f32[8,256], index: 1, kind: input, shape index: {}]
  %s2 = inlined_call_operand.hbm [shape: f32[1,1,8], index: 2, kind: output, shape index: {}]
  %s3 = sld [smem:[#allocation0]]
  $region30: #{tpu_custom_call.1} parent=0
    _
  %s5 = ssub.s32 1, %s3
  %s6 = scalar_select 0, %s5, %s3
  %7 = sst [smem:[#allocation3]] %s0
  $region1: #{tpu_custom_call.1} parent=0
    #allocation4 [shape = 'u8[8192]{0}', space=vmem, size = 0x2000, scoped, tag = 'input window, operand 1, single buffered']
    #allocation5 [shape = 's32[1]{0}', space=sflag, size = 0x4, scoped, tag = 'scoped memory for tpu_custom_call.1']
    #allocation6 [shape = 's32[1]{0}', space=sflag, size = 0x4, scoped, tag = 'scoped memory for tpu_custom_call.1']
    #allocation7 [shape = 'u8[512]{0}', space=vmem, size = 0x400, scoped, tag = 'output window, operand 0, single buffered']
    %8 = vsyncpa [#allocation5], 0
    %9 = vsyncpa [#allocation6], 0
    // Predicated region
    $region2: #{tpu_custom_call.1} parent=1 // pred_check
      _
    $region3: #{tpu_custom_call.1} parent=1 // pred_check_branch
      %11 = sbr.rel (0) target = $region5
    $region4: #{tpu_custom_call.1} parent=1 // pred_region
      _
    $region5: #{tpu_custom_call.1} parent=1 // pred_fallthru
      _
    // Predicated region
    $region6: #{tpu_custom_call.1} parent=1 // pred_check
      _
    $region7: #{tpu_custom_call.1} parent=1 // pred_check_branch
      %13 = sbr.rel (0) target = $region9
    $region8: #{tpu_custom_call.1} parent=1 // pred_region
      %15 = vsyncadd [#allocation5], 0
      %s17 = sshll.u32 %s1, 4
      %s18 = int_to_ptr.hbm [resolvable:$true] %s17
      %s19 = sshll.u32 [#allocation4], 4
      %s20 = int_to_ptr.vmem [resolvable:$true] %s19
      %22 = dma.hbm_to_vmem [thread:$0]  %s18, 256, %s20, [#allocation5]
    $region9: #{tpu_custom_call.1} parent=1 // pred_fallthru
      _
    // Predicated region
    $region10: #{tpu_custom_call.1} parent=1 // pred_check
      _
    $region11: #{tpu_custom_call.1} parent=1 // pred_check_branch
      %24 = sbr.rel (0) target = $region13
    $region12: #{tpu_custom_call.1} parent=1 // pred_region
      %26 = dma.done [#allocation5], 256
    $region13: #{tpu_custom_call.1} parent=1 // pred_fallthru
      _
    %p27 = scmp.eq.s32.totalorder 0, 0
    // Predicated region
    $region14: #{tpu_custom_call.1} parent=1 // pred_check
      %p28 = pneg %p27
    $region15: #{tpu_custom_call.1} parent=1 // pred_check_branch
      %30 = sbr.rel (%p28) target = $region17
    $region16: #{tpu_custom_call.1} parent=1 // pred_region
      %vm31 = vcmask 7168
      %32 = vst.msk [vmem:[#allocation2] sm:$0xff] %vm31, 0.0
    $region17: #{tpu_custom_call.1} parent=1 // pred_fallthru
      _
    %v33 = vld [vmem:[#allocation4] sm:$0xff]
    %v34 = vld [vmem:[#allocation4 + $0x8] sm:$0xff]
    %v35 = vmax.f32 %v33, 1e-06
    %v36 = vmax.f32 %v34, 1e-06
    %v37 = vrsqrt.pop %v35
    %v38 = vmul.f32 %v37, %v35
    %v39 = vmul.f32 %v38, %v37
    %v40 = vmul.f32 0.5, %v39
    %v41 = vsub.f32 1.5, %v40
    %v42 = vmul.f32 %v37, %v41
    %v43 = vmul.f32 %v35, %v42
    %vm44 = vcmp.eq.f32.partialorder %v35, inf
    %v45 = vsel %vm44, %v35, %v43
    %vm46 = vcmp.eq.f32.partialorder %v35, 0.0
    %v47 = vand.u32 %v35, 2147483648
    %v48 = vsel %vm46, %v47, %v45
    %v49 = vrsqrt.pop %v36
    %v50 = vmul.f32 %v49, %v36
    %v51 = vmul.f32 %v50, %v49
    %v52 = vmul.f32 0.5, %v51
    %v53 = vsub.f32 1.5, %v52
    %v54 = vmul.f32 %v49, %v53
    %v55 = vmul.f32 %v36, %v54
    %vm56 = vcmp.eq.f32.partialorder %v36, inf
    %v57 = vsel %vm56, %v36, %v55
    %vm58 = vcmp.eq.f32.partialorder %v36, 0.0
    %v59 = vand.u32 %v36, 2147483648
    %v60 = vsel %vm58, %v59, %v57
    %v61 = vmul.f32 %v35, %v48
    %v62 = vmul.f32 %v36, %v60
    %v63 = vld [vmem:[#allocation2] sm:$0xff]
    %v64 = vadd.f32 %v61, %v62
    %65 = vadd.xlane.f32.xlu0 %v64
    %v66 = vpop.xlane.xlu0 %65
    %v67 = vadd.f32 %v63, %v66
    %vm68 = vcmask 7168
    %69 = vst.msk [vmem:[#allocation2] sm:$0xff] %vm68, %v67
    // Predicated region
    $region18: #{tpu_custom_call.1} parent=1 // pred_check
      %p70 = pneg %p27
    $region19: #{tpu_custom_call.1} parent=1 // pred_check_branch
      %72 = sbr.rel (%p70) target = $region21
    $region20: #{tpu_custom_call.1} parent=1 // pred_region
      %v73 = vld [vmem:[#allocation2] sm:$0xff]
      %v74 = vmul.f32 %v73, 0.00390625
      %v75 = vpow.f32 %v74, 0.6666667
      %76 = vxpose.xlu0.b32.start [1/16] %v75, 128
      %77 = vxpose.xlu0.b32.cont [2/16] 0.0, 128
      %78 = vxpose.xlu0.b32.cont [3/16] 0.0, 128
      %79 = vxpose.xlu0.b32.cont [4/16] 0.0, 128
      %80 = vxpose.xlu0.b32.cont [5/16] 0.0, 128
      %81 = vxpose.xlu0.b32.cont [6/16] 0.0, 128
      %82 = vxpose.xlu0.b32.cont [7/16] 0.0, 128
      %83 = vxpose.xlu0.b32.cont [8/16] 0.0, 128
      %84 = vxpose.xlu0.b32.cont [9/16] 0.0, 128
      %85 = vxpose.xlu0.b32.cont [10/16] 0.0, 128
      %86 = vxpose.xlu0.b32.cont [11/16] 0.0, 128
      %87 = vxpose.xlu0.b32.cont [12/16] 0.0, 128
      %88 = vxpose.xlu0.b32.cont [13/16] 0.0, 128
      %89 = vxpose.xlu0.b32.cont [14/16] 0.0, 128
      %90 = vxpose.xlu0.b32.cont [15/16] 0.0, 128
      %91 = vxpose.xlu0.b32.end [16/16] 0.0, 128
      %v92 = vpop.trf.xlu0
      %v93 = vpop.trf.xlu0
      %v94 = vpop.trf.xlu0
      %v95 = vpop.trf.xlu0
      %v96 = vpop.trf.xlu0
      %v97 = vpop.trf.xlu0
      %v98 = vpop.trf.xlu0
      %v99 = vpop.trf.xlu0
      %v100 = vpop.trf.xlu0
      %v101 = vpop.trf.xlu0
      %v102 = vpop.trf.xlu0
      %v103 = vpop.trf.xlu0
      %v104 = vpop.trf.xlu0
      %v105 = vpop.trf.xlu0
      %v106 = vpop.trf.xlu0
      %v107 = vpop.trf.xlu0
      %vm108 = vcmask 57344
      %109 = vst.msk [vmem:[#allocation7] sm:$0x1] %vm108, %v92
    $region21: #{tpu_custom_call.1} parent=1 // pred_fallthru
      _
    // Predicated region
    $region22: #{tpu_custom_call.1} parent=1 // pred_check
      _
    $region23: #{tpu_custom_call.1} parent=1 // pred_check_branch
      %111 = sbr.rel (0) target = $region25
    $region24: #{tpu_custom_call.1} parent=1 // pred_region
      %113 = vsyncadd [#allocation6], 0
      %s115 = sshll.u32 [#allocation7], 4
      %s116 = int_to_ptr.vmem [resolvable:$true] %s115
      %s117 = sshll.u32 %s2, 4
      %s118 = int_to_ptr.hbm [resolvable:$true] %s117
      %120 = dma.vmem_to_hbm [thread:$0]  %s116, 16, %s118, [#allocation6]
    $region25: #{tpu_custom_call.1} parent=1 // pred_fallthru
      _
    // Predicated region
    $region26: #{tpu_custom_call.1} parent=1 // pred_check
      _
    $region27: #{tpu_custom_call.1} parent=1 // pred_check_branch
      %122 = sbr.rel (0) target = $region29
    $region28: #{tpu_custom_call.1} parent=1 // pred_region
      %124 = dma.done [#allocation6], 16
    $region29: #{tpu_custom_call.1} parent=1 // pred_fallthru
      _
    %125 = vsyncpa [#allocation5], 1
    %126 = vsyncpa [#allocation6], 1

</llo_original>
